<compile_context>
chip_gen: v7x
topology: tpu7x:2x2x1
jax: 0.10.0
libtpu: 0.0.40
codegen_flags: <defaults>
</compile_context>

<pallas_src>
import jax
import jax.numpy as jnp
from jax.experimental import pallas as pl
from jax.experimental.pallas import tpu as pltpu


def _round_up(x, m):
    return (x + m - 1) // m * m


def _pick_tm(n_tokens, tm_max=2048):
    """Rows per tile: multiple of 128 (lane-dense ids / out tiles), as large as
    possible to amortize grid-step overhead, but >=2 tiles when there is
    enough work so v7x's 2 TensorCores can split the 'parallel' axis."""
    n128 = _round_up(max(n_tokens, 1), 128)
    if n128 <= 128:
        return 128
    return min(tm_max, _round_up((n128 + 1) // 2, 128))


def _lut_gather_kernel(ids_ref, tbl_ref, o_ref):
    # ids_ref: (1, 1, TM) int32  token ids of this row tile, lane-dense
    # tbl_ref: (T8, Vp)   f32    precomputed logits table (transposed), resident
    # o_ref:   (T8, TM)   f32    logits for this tile (targets along sublanes)
    vp = tbl_ref.shape[1]
    tm = ids_ref.shape[-1]

    ids = ids_ref[0]                                              # (1, TM)
    viota = jax.lax.broadcasted_iota(jnp.int32, (vp, tm), 0)      # (Vp, TM)
    # One-hot columns select table columns; values 0/1 in f32 and an f32 table
    # make the gather bit-exact on the MXU.
    one_hot = jnp.where(viota == ids, 1.0, 0.0).astype(tbl_ref.dtype)
    o_ref[...] = jnp.dot(tbl_ref[...], one_hot,
                         preferred_element_type=jnp.float32)      # (T8, TM)


def lut_gather(word_ids_flat, logits_table_t, *, tm=None):
    """word_ids_flat: [N] int32 -> logits [T8, N_pad] f32 (transposed, dense).

    Contract: ids must be in [0, vocab_size). Out-of-range ids (or ids landing
    in padded vocab columns) silently produce zero logits, unlike PyTorch
    nn.Embedding which raises.
    """
    n = word_ids_flat.shape[0]
    t8, vp = logits_table_t.shape
    if tm is None:
        tm = _pick_tm(n)

    n_tiles = pl.cdiv(n, tm)
    n_pad = n_tiles * tm

    ids = word_ids_flat.astype(jnp.int32)
    if n_pad != n:
        # Pad the ragged last tile with id 0 (a valid row); padded tokens are
        # sliced off by the caller.
        ids = jnp.pad(ids, (0, n_pad - n))
    ids3d = ids.reshape(n_tiles, 1, tm)

    flops = 2 * t8 * vp * n_pad
    bytes_accessed = (ids3d.size * 4 + logits_table_t.size * 4
                      + t8 * n_pad * 4)

    out = pl.pallas_call(
        _lut_gather_kernel,
        out_shape=jax.ShapeDtypeStruct((t8, n_pad), jnp.float32),
        grid_spec=pl.GridSpec(
            grid=(n_tiles,),
            in_specs=[
                pl.BlockSpec((1, 1, tm), lambda i: (i, 0, 0)),   # ids row tile
                pl.BlockSpec((t8, vp), lambda i: (0, 0)),        # table, resident
            ],
            out_specs=pl.BlockSpec((t8, tm), lambda i: (0, i)),
        ),
        compiler_params=pltpu.CompilerParams(
            # Row tiles are independent -> shard across v7x's 2 TensorCores;
            # neutral on single-TC v5e/v6e.
            dimension_semantics=("parallel",),
        ),
        cost_estimate=pl.CostEstimate(
            flops=flops, transcendentals=0, bytes_accessed=bytes_accessed),
    )(ids3d, logits_table_t)
    return out  # caller slices [:target_num, :n]


class PallasModel:
    """Concrete instantiation of the DAG `Model`:
         embedding -> hidden_linear(ReLU) -> output_linear (output_layer_flag)
       Parameters are built deterministically in-script.
    """

    def __init__(self, vocab_size=64, embed_dim=128, hidden_dim=128,
                 target_num=8, seed=0):
        k = jax.random.PRNGKey(seed)
        k_emb, k_w1, k_w2 = jax.random.split(k, 3)
        self.vocab_size = vocab_size
        self.target_num = target_num

        # Raw parameters (f32), same roles as nn.Embedding / nn.Linear weights.
        self.emb = jax.random.normal(k_emb, (vocab_size, embed_dim),
                                     jnp.float32) * 0.02
        self.w1 = jax.random.normal(k_w1, (embed_dim, hidden_dim),
                                    jnp.float32) * 0.05
        self.b1 = jnp.zeros((hidden_dim,), jnp.float32)
        self.w2 = jax.random.normal(k_w2, (hidden_dim, target_num),
                                    jnp.float32) * 0.05
        self.b2 = jnp.zeros((target_num,), jnp.float32)

        # Collapse the whole per-token network into an f32 lookup table once.
        # Exactly the same math as the layer-by-layer forward (no cross-token
        # interaction), so no bf16 re-rounding concerns.
        tbl = jnp.maximum(self.emb @ self.w1 + self.b1, 0.0) @ self.w2 + self.b2
        v_pad = _round_up(vocab_size, 128)   # lane-dense one-hot gather
        t_pad = _round_up(target_num, 8)     # sublane-dense f32 output rows
        # Stored transposed: (targets, vocab). Padded rows/cols are zero.
        self.logits_table_t = (jnp.zeros((t_pad, v_pad), jnp.float32)
                               .at[:target_num, :vocab_size].set(tbl.T))
        # TODO(synk): for vocabularies too large for a VMEM-resident one-hot
        # (Vp x tm) per tile, tile the vocab axis with an accumulator or switch
        # to a scalar-prefetch DMA row gather (pl.ANY table + make_async_copy).

    def forward(self, word_ids, *, tm=None):
        # word_ids: [B, S] int32  (the 'word' cluster of one model input)
        b, s = word_ids.shape
        n = b * s
        out_t = lut_gather(word_ids.reshape(-1), self.logits_table_t, tm=tm)
        # representation of the output layer, per token: [B, S, target_num]
        return out_t[:self.target_num, :n].T.reshape(b, s, self.target_num)


def reference_forward(model, word_ids):
    """Layer-by-layer pure-JAX forward from the raw weights (the original
    module's semantics): embedding gather -> Linear+ReLU -> output Linear."""
    x = jnp.take(model.emb, word_ids.reshape(-1), axis=0)
    h = jnp.maximum(x @ model.w1 + model.b1, 0.0)
    out = h @ model.w2 + model.b2
    return out.reshape(word_ids.shape[0], word_ids.shape[1], model.target_num)


if __name__ == "__main__":
    key = jax.random.PRNGKey(0)
    B, S, V = 2, 8, 64
    word_ids = jax.random.randint(key, (B, S), 0, V, dtype=jnp.int32)

    model = PallasModel(vocab_size=V, embed_dim=128, hidden_dim=128,
                        target_num=8, seed=0)

    out = jax.block_until_ready(model.forward(word_ids))
    ref = jax.block_until_ready(reference_forward(model, word_ids))

    assert out.shape == (B, S, 8)
    assert jnp.allclose(out, ref, atol=1e-4, rtol=1e-4), \
        float(jnp.max(jnp.abs(out - ref)))

    print("KERNEL_OK")
</pallas_src>

<mosaic_0001>
module attributes {stable_mosaic.version = 11 : i64} {
  func.func @_lut_gather_kernel(%arg0: i32, %arg1: memref<1x1x128xi32, #tpu.memory_space<vmem>>, %arg2: memref<8x128xf32, #tpu.memory_space<vmem>>, %arg3: memref<8x128xf32, #tpu.memory_space<vmem>>) attributes {dimension_semantics = [#tpu.dimension_semantics<parallel>], iteration_bounds = array<i64: 1>, scalar_prefetch = 0 : i64, scratch_operands = 0 : i64, tpu.core_type = #tpu.core_type<tc>, window_params = [{transform_indices = @transform_0, window_bounds = array<i64: 1, 1, 128>}, {pipeline_mode = #tpu.pipeline_mode<synchronous>, transform_indices = @transform_1, window_bounds = array<i64: 8, 128>}, {transform_indices = @transform_2, window_bounds = array<i64: 8, 128>}]} {
    %c0 = arith.constant 0 : index
    %c0_0 = arith.constant 0 : index
    %c0_1 = arith.constant 0 : index
    %0 = vector.load %arg1[%c0, %c0_0, %c0_1] : memref<1x1x128xi32, #tpu.memory_space<vmem>>, vector<1x1x128xi32>
    %1 = vector.shape_cast %0 : vector<1x1x128xi32> to vector<1x128xi32>
    %2 = tpu.iota {dimensions = array<i32: 0>} : vector<128x128xi32>
    %3 = vector.broadcast %1 : vector<1x128xi32> to vector<128x128xi32>
    %4 = arith.cmpi eq, %2, %3 : vector<128x128xi32>
    %cst = arith.constant 1.000000e+00 : f32
    %cst_2 = arith.constant 0.000000e+00 : f32
    %5 = vector.broadcast %cst : f32 to vector<128x128xf32>
    %6 = vector.broadcast %cst_2 : f32 to vector<128x128xf32>
    %7 = arith.select %4, %5, %6 : vector<128x128xi1>, vector<128x128xf32>
    %c0_3 = arith.constant 0 : index
    %c0_4 = arith.constant 0 : index
    %8 = vector.load %arg2[%c0_3, %c0_4] : memref<8x128xf32, #tpu.memory_space<vmem>>, vector<8x128xf32>
    %cst_5 = arith.constant dense<0.000000e+00> : vector<8x128xf32>
    %9 = tpu.matmul %8, %7, %cst_5 {dimension_numbers = #tpu.dot_dimension_numbers<[1], [0], [0], [1], [0, 0, 1, 1], [], []>} : vector<8x128xf32>, vector<128x128xf32>, vector<8x128xf32> -> vector<8x128xf32>
    %c0_6 = arith.constant 0 : index
    %c0_7 = arith.constant 0 : index
    %10 = vector.load %arg3[%c0_6, %c0_7] : memref<8x128xf32, #tpu.memory_space<vmem>>, vector<8x128xf32>
    tpu.vector_store %arg3[%c0_6, %c0_7], %9 {strides = array<i32>} : memref<8x128xf32, #tpu.memory_space<vmem>>, vector<8x128xf32>,
    return
  }
  func.func @transform_0(%arg0: i32) -> (i32, i32, i32) {
    %c0_i32 = arith.constant 0 : i32
    %c0_i32_0 = arith.constant 0 : i32
    %c0_i32_1 = arith.constant 0 : i32
    return %arg0, %c0_i32, %c0_i32_0 : i32, i32, i32
  }
  func.func @transform_1(%arg0: i32) -> (i32, i32) {
    %c0_i32 = arith.constant 0 : i32
    %c0_i32_0 = arith.constant 0 : i32
    %c0_i32_1 = arith.constant 0 : i32
    return %c0_i32, %c0_i32_0 : i32, i32
  }
  func.func @transform_2(%arg0: i32) -> (i32, i32) {
    %c0_i32 = arith.constant 0 : i32
    %c0_i32_0 = arith.constant 0 : i32
    return %c0_i32, %arg0 : i32, i32
  }
}

</mosaic_0001>

<llo_original>
// kernel: tpu_custom_call.1
$region0: #{tpu_custom_call.1}
  #allocation0 [shape = 'u32[]', space=smem, size = 0x4, offset = 0x4, fixed_abs, tag = 'smem constant byte address 0x4 - core index']
  #allocation1 [shape = 'u32[144,128]{1,0:T(1,128)}', space=vmem, size = 0x12000, scoped, tag = 'internal scratch']
  %s0 = inlined_call_operand.hbm [shape: s32[1,1,128], index: 0, kind: input, shape index: {}]
  %s1 = inlined_call_operand.hbm [shape: f32[8,128], index: 1, kind: input, shape index: {}]
  %s2 = inlined_call_operand.hbm [shape: f32[8,128], index: 2, kind: output, shape index: {}]
  %s3 = sld [smem:[#allocation0]]
  $region26: #{tpu_custom_call.1} parent=0
    _
  %s5 = ssub.s32 1, %s3
  %s6 = scalar_select 0, %s5, %s3
  $region1: #{tpu_custom_call.1} parent=0
    #allocation2 [shape = 'u8[512]{0}', space=vmem, size = 0x400, scoped, tag = 'input window, operand 0, single buffered']
    #allocation3 [shape = 's32[1]{0}', space=sflag, size = 0x4, scoped, tag = 'scoped memory for tpu_custom_call.1']
    #allocation4 [shape = 's32[1]{0}', space=sflag, size = 0x4, scoped, tag = 'scoped memory for tpu_custom_call.1']
    #allocation5 [shape = 'u8[4096]{0}', space=vmem, size = 0x1000, scoped, tag = 'input window, operand 1, single buffered']
    #allocation6 [shape = 's32[1]{0}', space=sflag, size = 0x4, scoped, tag = 'scoped memory for tpu_custom_call.1']
    #allocation7 [shape = 'u8[4096]{0}', space=vmem, size = 0x1000, scoped, tag = 'output window, operand 0, single buffered']
    %7 = vsyncpa [#allocation3], 0
    %8 = vsyncpa [#allocation6], 0
    %9 = vsyncpa [#allocation4], 0
    // Predicated region
    $region2: #{tpu_custom_call.1} parent=1 // pred_check
      _
    $region3: #{tpu_custom_call.1} parent=1 // pred_check_branch
      %11 = sbr.rel (0) target = $region5
    $region4: #{tpu_custom_call.1} parent=1 // pred_region
      %s13 = ssub.s32 16, 16
      %14 = vsyncadd [#allocation3], %s13
      %s16 = sshll.u32 [#allocation2], 4
      %s17 = int_to_ptr.vmem [resolvable:$true] %s16
      %19 = dma.hbm_to_vmem [thread:$0]  %s0, 16, %s17, [#allocation3]
    $region5: #{tpu_custom_call.1} parent=1 // pred_fallthru
      _
    // Predicated region
    $region6: #{tpu_custom_call.1} parent=1 // pred_check
      _
    $region7: #{tpu_custom_call.1} parent=1 // pred_check_branch
      %21 = sbr.rel (0) target = $region9
    $region8: #{tpu_custom_call.1} parent=1 // pred_region
      %s23 = ssub.s32 128, 128
      %24 = vsyncadd [#allocation6], %s23
      %s26 = sshll.u32 [#allocation5], 4
      %s27 = int_to_ptr.vmem [resolvable:$true] %s26
      %29 = dma.hbm_to_vmem [thread:$0]  %s1, 128, %s27, [#allocation6]
    $region9: #{tpu_custom_call.1} parent=1 // pred_fallthru
      _
    // Predicated region
    $region10: #{tpu_custom_call.1} parent=1 // pred_check
      _
    $region11: #{tpu_custom_call.1} parent=1 // pred_check_branch
      %31 = sbr.rel (0) target = $region13
    $region12: #{tpu_custom_call.1} parent=1 // pred_region
      %32 = dma.done [#allocation3], 16
    $region13: #{tpu_custom_call.1} parent=1 // pred_fallthru
      _
    // Predicated region
    $region14: #{tpu_custom_call.1} parent=1 // pred_check
      _
    $region15: #{tpu_custom_call.1} parent=1 // pred_check_branch
      %34 = sbr.rel (0) target = $region17
    $region16: #{tpu_custom_call.1} parent=1 // pred_region
      %35 = dma.done [#allocation6], 128
    $region17: #{tpu_custom_call.1} parent=1 // pred_fallthru
      _
    %v36 = vld [vmem:[#allocation2] sm:$0x1]
    %v37 = vlaneseq
    %v38 = vshrl.u32 %v37, 7
    %v39 = vadd.s32 %v38, 8
    %v40 = vadd.s32 %v38, 16
    %v41 = vadd.s32 %v38, 24
    %v42 = vadd.s32 %v38, 32
    %v43 = vadd.s32 %v38, 40
    %v44 = vadd.s32 %v38, 48
    %v45 = vadd.s32 %v38, 56
    %v46 = vadd.s32 %v38, 64
    %v47 = vadd.s32 %v38, 72
    %v48 = vadd.s32 %v38, 80
    %v49 = vadd.s32 %v38, 88
    %v50 = vadd.s32 %v38, 96
    %v51 = vadd.s32 %v38, 104
    %v52 = vadd.s32 %v38, 112
    %v53 = vadd.s32 %v38, 120
    %v54 = vlaneseq
    %v55 = vshrl.u32 %v54, 7
    %v56 = vsub.s32 0, %v55
    %v57 = vrot.slane %v36, %v56
    %vm58 = vcmp.eq.s32.totalorder %v38, %v57
    %vm59 = vcmp.eq.s32.totalorder %v39, %v57
    %vm60 = vcmp.eq.s32.totalorder %v40, %v57
    %vm61 = vcmp.eq.s32.totalorder %v41, %v57
    %vm62 = vcmp.eq.s32.totalorder %v42, %v57
    %vm63 = vcmp.eq.s32.totalorder %v43, %v57
    %vm64 = vcmp.eq.s32.totalorder %v44, %v57
    %vm65 = vcmp.eq.s32.totalorder %v45, %v57
    %vm66 = vcmp.eq.s32.totalorder %v46, %v57
    %vm67 = vcmp.eq.s32.totalorder %v47, %v57
    %vm68 = vcmp.eq.s32.totalorder %v48, %v57
    %vm69 = vcmp.eq.s32.totalorder %v49, %v57
    %vm70 = vcmp.eq.s32.totalorder %v50, %v57
    %vm71 = vcmp.eq.s32.totalorder %v51, %v57
    %vm72 = vcmp.eq.s32.totalorder %v52, %v57
    %vm73 = vcmp.eq.s32.totalorder %v53, %v57
    %v74 = vsel %vm58, 1.0, 0.0
    %v75 = vsel %vm59, 1.0, 0.0
    %v76 = vsel %vm60, 1.0, 0.0
    %v77 = vsel %vm61, 1.0, 0.0
    %v78 = vsel %vm62, 1.0, 0.0
    %v79 = vsel %vm63, 1.0, 0.0
    %v80 = vsel %vm64, 1.0, 0.0
    %v81 = vsel %vm65, 1.0, 0.0
    %v82 = vsel %vm66, 1.0, 0.0
    %v83 = vsel %vm67, 1.0, 0.0
    %v84 = vsel %vm68, 1.0, 0.0
    %v85 = vsel %vm69, 1.0, 0.0
    %v86 = vsel %vm70, 1.0, 0.0
    %v87 = vsel %vm71, 1.0, 0.0
    %v88 = vsel %vm72, 1.0, 0.0
    %v89 = vsel %vm73, 1.0, 0.0
    %v90 = vld [vmem:[#allocation5] sm:$0xff]
    %91 = vmatprep.subr.mxu0 0.0
    %92 = vmatpush1.msra.mxu0 %v74
    %93 = vmatprep.subr.mxu0 0.0
    %94 = vmatpush1.msra.mxu0 %v75
    %95 = vmatprep.subr.mxu0 0.0
    %96 = vmatpush1.msra.mxu0 %v76
    %97 = vmatprep.subr.mxu0 0.0
    %98 = vmatpush1.msra.mxu0 %v77
    %99 = vmatprep.subr.mxu0 0.0
    %100 = vmatpush1.msra.mxu0 %v78
    %101 = vmatprep.subr.mxu0 0.0
    %102 = vmatpush1.msra.mxu0 %v79
    %103 = vmatprep.subr.mxu0 0.0
    %104 = vmatpush1.msra.mxu0 %v80
    %105 = vmatprep.subr.mxu0 0.0
    %106 = vmatpush1.msra.mxu0 %v81
    %107 = vmatprep.subr.mxu0 0.0
    %108 = vmatpush1.msra.mxu0 %v82
    %109 = vmatprep.subr.mxu0 0.0
    %110 = vmatpush1.msra.mxu0 %v83
    %111 = vmatprep.subr.mxu0 0.0
    %112 = vmatpush1.msra.mxu0 %v84
    %113 = vmatprep.subr.mxu0 0.0
    %114 = vmatpush1.msra.mxu0 %v85
    %115 = vmatprep.subr.mxu0 0.0
    %116 = vmatpush1.msra.mxu0 %v86
    %117 = vmatprep.subr.mxu0 0.0
    %118 = vmatpush1.msra.mxu0 %v87
    %119 = vmatprep.subr.mxu0 0.0
    %120 = vmatpush1.msra.mxu0 %v88
    %121 = vmatprep.subr.mxu0 0.0
    %122 = vmatpush1.msra.mxu0 %v89
    %123 = vmatprep.subr.mxu0 0.0
    %124 = vmatpush1.msra.mxu0 0.0
    %125 = vmatprep.subr.mxu0 0.0
    %126 = vmatpush1.msra.mxu0 0.0
    %127 = vmatprep.subr.mxu0 0.0
    %128 = vmatpush1.msra.mxu0 0.0
    %129 = vmatprep.subr.mxu0 0.0
    %130 = vmatpush1.msra.mxu0 0.0
    %131 = vmatprep.subr.mxu0 0.0
    %132 = vmatpush1.msra.mxu0 0.0
    %133 = vmatprep.subr.mxu0 0.0
    %134 = vmatpush1.msra.mxu0 0.0
    %135 = vmatprep.subr.mxu0 0.0
    %136 = vmatpush1.msra.mxu0 0.0
    %137 = vmatprep.subr.mxu0 0.0
    %138 = vmatpush1.msra.mxu0 0.0
    %139 = vmatprep.subr.mxu0 0.0
    %140 = vmatpush1.msra.mxu0 0.0
    %141 = vmatprep.subr.mxu0 0.0
    %142 = vmatpush1.msra.mxu0 0.0
    %143 = vmatprep.subr.mxu0 0.0
    %144 = vmatpush1.msra.mxu0 0.0
    %145 = vmatprep.subr.mxu0 0.0
    %146 = vmatpush1.msra.mxu0 0.0
    %147 = vmatprep.subr.mxu0 0.0
    %148 = vmatpush1.msra.mxu0 0.0
    %149 = vmatprep.subr.mxu0 0.0
    %150 = vmatpush1.msra.mxu0 0.0
    %151 = vmatprep.subr.mxu0 0.0
    %152 = vmatpush1.msra.mxu0 0.0
    %153 = vmatprep.subr.mxu0 0.0
    %154 = vmatpush1.msra.mxu0 0.0
    %155 = vmatprep.mubr.f32.mxu0 0.0
    %156 = vmatmul.mubr.f32.gmra.mrb[0].mxu0 %v90
    %v157 = vpop.f32.mrb[0].mxu0
    %v158 = vadd.f32 0.0, %v157
    %v159 = vpop.f32.mrb[0].mxu0
    %160 = vdwg.mxu0
    %161 = vst [vmem:[#allocation7] sm:$0xff] %v158
    // Predicated region
    $region18: #{tpu_custom_call.1} parent=1 // pred_check
      _
    $region19: #{tpu_custom_call.1} parent=1 // pred_check_branch
      %163 = sbr.rel (0) target = $region21
    $region20: #{tpu_custom_call.1} parent=1 // pred_region
      %s165 = ssub.s32 128, 128
      %166 = vsyncadd [#allocation4], %s165
      %s168 = sshll.u32 [#allocation7], 4
      %s169 = int_to_ptr.vmem [resolvable:$true] %s168
      %171 = dma.vmem_to_hbm [thread:$0]  %s169, 128, %s2, [#allocation4]
    $region21: #{tpu_custom_call.1} parent=1 // pred_fallthru
      _
    // Predicated region
    $region22: #{tpu_custom_call.1} parent=1 // pred_check
      _
    $region23: #{tpu_custom_call.1} parent=1 // pred_check_branch
      %173 = sbr.rel (0) target = $region25
    $region24: #{tpu_custom_call.1} parent=1 // pred_region
      %174 = dma.done [#allocation4], 128
    $region25: #{tpu_custom_call.1} parent=1 // pred_fallthru
      _
    %175 = vsyncpa [#allocation3], 1
    %176 = vsyncpa [#allocation6], 1
    %177 = vsyncpa [#allocation4], 1

</llo_original>
